<compile_context>
chip_gen: v7x
topology: tpu7x:2x2x1
jax: 0.10.0
libtpu: 0.0.40
codegen_flags: <defaults>
</compile_context>

<pallas_src>
import functools

import jax
import jax.numpy as jnp
from jax.experimental import pallas as pl
from jax.experimental.pallas import tpu as pltpu


# ----------------------------------------------------------------------------
# Pallas kernel: paint up to `max_spots` filled rotated ellipses with 255.
# ----------------------------------------------------------------------------
def _spots_kernel(params_ref, trig_ref, img_ref, out_ref, *, th, w, max_spots):
    # params_ref: (max_spots*4,) f32  SMEM  [cxr, cyr, 1/a^2, 1/b^2] per spot
    # trig_ref  : (2,)           f32  SMEM  [cos(angle), sin(angle)]
    # img_ref   : (th, w)        u8   VMEM  input row-tile
    # out_ref   : (th, w)        u8   VMEM  output row-tile
    i = pl.program_id(0)

    ys = (jax.lax.broadcasted_iota(jnp.int32, (th, w), 0) + i * th).astype(jnp.float32)
    xs = jax.lax.broadcasted_iota(jnp.int32, (th, w), 1).astype(jnp.float32)

    cos_a = trig_ref[0]
    sin_a = trig_ref[1]
    # Rotate the pixel grid once; shared across all spots (hoisted work).
    xr = xs * cos_a + ys * sin_a
    yr = ys * cos_a - xs * sin_a

    mask = jnp.zeros((th, w), dtype=jnp.bool_)
    # max_spots is small & static: unrolled Python loop, static SMEM indices.
    for s in range(max_spots):
        cxr = params_ref[4 * s + 0]
        cyr = params_ref[4 * s + 1]
        inv_a2 = params_ref[4 * s + 2]
        inv_b2 = params_ref[4 * s + 3]
        dx = xr - cxr
        dy = yr - cyr
        inside = (dx * dx) * inv_a2 + (dy * dy) * inv_b2 <= 1.0
        mask = jnp.logical_or(mask, inside)

    # f32 select path (mask is an i1/32-bit layout); casts are per-tile only.
    x = img_ref[...].astype(jnp.float32)
    out_ref[...] = jnp.where(mask, 255.0, x).astype(jnp.uint8)


# ----------------------------------------------------------------------------
# Wrapper: draw random spot parameters, then run the tiled Pallas kernel.
# ----------------------------------------------------------------------------
@functools.partial(
    jax.jit,
    static_argnames=("spots_range", "w_range", "h_range", "row_block"))
def random_spots(image_u8, key,
                 spots_range=(3, 8), w_range=(2, 6), h_range=(2, 6),
                 row_block=256):
    """Pallas/TPU equivalent of RandomSpots.forward on an (H, W) uint8 image."""
    h, w = image_u8.shape
    max_spots = int(spots_range[1])

    k_n, k_ang, k_cx, k_cy, k_w, k_h = jax.random.split(key, 6)
    # random.randint(a, b) is inclusive -> maxval = b + 1
    num_spots = jax.random.randint(k_n, (), spots_range[0],
                                   spots_range[1] + 1, dtype=jnp.int32)
    angle = jax.random.randint(k_ang, (), 0, 361, dtype=jnp.int32)
    theta = angle.astype(jnp.float32) * (jnp.pi / 180.0)
    cos_a = jnp.cos(theta)
    sin_a = jnp.sin(theta)
    trig = jnp.stack([cos_a, sin_a]).astype(jnp.float32)

    cx = jax.random.randint(k_cx, (max_spots,), 0, w, dtype=jnp.int32).astype(jnp.float32)
    cy = jax.random.randint(k_cy, (max_spots,), 0, h, dtype=jnp.int32).astype(jnp.float32)
    sw = jax.random.randint(k_w, (max_spots,), w_range[0], w_range[1] + 1,
                            dtype=jnp.int32).astype(jnp.float32)
    sh = jax.random.randint(k_h, (max_spots,), h_range[0], h_range[1] + 1,
                            dtype=jnp.int32).astype(jnp.float32)

    # Pre-rotate centers into the ellipse frame; park inactive spots far away
    # so the kernel loop needs no per-pixel `s < num_spots` masking.
    active = jnp.arange(max_spots) < num_spots
    cxr = cx * cos_a + cy * sin_a
    cyr = cy * cos_a - cx * sin_a
    far = jnp.float32(1.0e6)
    cxr = jnp.where(active, cxr, far)
    cyr = jnp.where(active, cyr, far)
    inv_a2 = 1.0 / (sw * sw)
    inv_b2 = 1.0 / (sh * sh)
    params = jnp.stack([cxr, cyr, inv_a2, inv_b2], axis=1).reshape(-1)
    params = params.astype(jnp.float32)                   # (max_spots*4,)

    # Row tile: full height, or a multiple of 32 (uint8 sublane packing).
    if h <= row_block:
        th = h
    else:
        th = max(32, (row_block // 32) * 32)
    grid = (pl.cdiv(h, th),)

    kernel = functools.partial(_spots_kernel, th=th, w=w, max_spots=max_spots)
    cost = pl.CostEstimate(
        flops=9 * h * w * max_spots,
        transcendentals=0,
        bytes_accessed=2 * h * w + 4 * (4 * max_spots + 2),
    )

    smem_spec = pl.BlockSpec(memory_space=pltpu.MemorySpace.SMEM)
    out = pl.pallas_call(
        kernel,
        out_shape=jax.ShapeDtypeStruct((h, w), jnp.uint8),
        grid=grid,
        in_specs=[
            smem_spec,                                    # spot params (SMEM)
            smem_spec,                                    # cos/sin     (SMEM)
            pl.BlockSpec((th, w), lambda i: (i, 0)),      # image tile  (uint8)
        ],
        out_specs=pl.BlockSpec((th, w), lambda i: (i, 0)),
        compiler_params=pltpu.CompilerParams(
            dimension_semantics=("parallel",),
            vmem_limit_bytes=32 * 1024 * 1024,
        ),
        cost_estimate=cost,
    )(params, trig, image_u8)
    return out


if __name__ == "__main__":
    key = jax.random.PRNGKey(0)
    k_img, k_spots, k_spots2 = jax.random.split(key, 3)

    H, W = 64, 256  # lane-dense width (multiple of 128), 2 row tiles of 32

    # Test 1: all-zero binarized image -> every drawn spot must show up.
    zeros = jnp.zeros((H, W), dtype=jnp.uint8)
    out0 = random_spots(zeros, k_spots,
                        spots_range=(3, 8), w_range=(2, 6), h_range=(3, 7),
                        row_block=32)
    out0 = jax.block_until_ready(out0)
    assert out0.shape == (H, W) and out0.dtype == jnp.uint8
    assert bool(jnp.all((out0 == 0) | (out0 == 255)))     # stays binarized
    assert bool(jnp.any(out0 == 255))                     # spots were drawn
    assert bool(jnp.any(out0 != zeros))

    # Test 2: random binarized image -> spots only ever add 255, never remove.
    image = jnp.where(jax.random.bernoulli(k_img, 0.5, (H, W)), 255, 0)
    image = image.astype(jnp.uint8)
    out1 = random_spots(image, k_spots2,
                        spots_range=(3, 8), w_range=(2, 6), h_range=(3, 7),
                        row_block=32)
    out1 = jax.block_until_ready(out1)
    assert out1.shape == (H, W) and out1.dtype == jnp.uint8
    assert bool(jnp.all((out1 == 0) | (out1 == 255)))     # stays binarized
    assert bool(jnp.all(out1 >= image))                   # spots only add 255

    print("KERNEL_OK")
</pallas_src>

<mosaic_0001>
module attributes {stable_mosaic.version = 11 : i64} {
  func.func @_spots_kernel(%arg0: i32, %arg1: memref<32xf32, #tpu.memory_space<smem>>, %arg2: memref<2xf32, #tpu.memory_space<smem>>, %arg3: memref<32x256xi8, #tpu.memory_space<vmem>>, %arg4: memref<32x256xi8, #tpu.memory_space<vmem>>) attributes {dimension_semantics = [#tpu.dimension_semantics<parallel>], iteration_bounds = array<i64: 2>, scalar_prefetch = 0 : i64, scratch_operands = 0 : i64, tpu.core_type = #tpu.core_type<tc>, window_params = [{transform_indices = @transform_0, window_bounds = array<i64: 32>}, {transform_indices = @transform_1, window_bounds = array<i64: 2>}, {transform_indices = @transform_2, window_bounds = array<i64: 32, 256>}, {transform_indices = @transform_3, window_bounds = array<i64: 32, 256>}]} {
    %0 = tpu.iota {dimensions = array<i32: 0>} : vector<32x256xi32>
    %c32_i32 = arith.constant 32 : i32
    %1 = arith.muli %arg0, %c32_i32 : i32
    %2 = vector.broadcast %1 : i32 to vector<32x256xi32>
    %3 = arith.addi %0, %2 : vector<32x256xi32>
    %4 = arith.sitofp %3 : vector<32x256xi32> to vector<32x256xf32>
    %5 = tpu.iota {dimensions = array<i32: 1>} : vector<32x256xi32>
    %6 = arith.sitofp %5 : vector<32x256xi32> to vector<32x256xf32>
    %c0 = arith.constant 0 : index
    %7 = memref.load %arg2[%c0] : memref<2xf32, #tpu.memory_space<smem>>
    %c1 = arith.constant 1 : index
    %8 = memref.load %arg2[%c1] : memref<2xf32, #tpu.memory_space<smem>>
    %9 = vector.broadcast %7 : f32 to vector<32x256xf32>
    %10 = arith.mulf %6, %9 : vector<32x256xf32>
    %11 = vector.broadcast %8 : f32 to vector<32x256xf32>
    %12 = arith.mulf %4, %11 : vector<32x256xf32>
    %13 = arith.addf %10, %12 : vector<32x256xf32>
    %14 = vector.broadcast %7 : f32 to vector<32x256xf32>
    %15 = arith.mulf %4, %14 : vector<32x256xf32>
    %16 = vector.broadcast %8 : f32 to vector<32x256xf32>
    %17 = arith.mulf %6, %16 : vector<32x256xf32>
    %18 = arith.subf %15, %17 : vector<32x256xf32>
    %false = arith.constant false
    %19 = vector.broadcast %false : i1 to vector<32x256xi1>
    %c0_0 = arith.constant 0 : index
    %20 = memref.load %arg1[%c0_0] : memref<32xf32, #tpu.memory_space<smem>>
    %c1_1 = arith.constant 1 : index
    %21 = memref.load %arg1[%c1_1] : memref<32xf32, #tpu.memory_space<smem>>
    %c2 = arith.constant 2 : index
    %22 = memref.load %arg1[%c2] : memref<32xf32, #tpu.memory_space<smem>>
    %c3 = arith.constant 3 : index
    %23 = memref.load %arg1[%c3] : memref<32xf32, #tpu.memory_space<smem>>
    %24 = vector.broadcast %20 : f32 to vector<32x256xf32>
    %25 = arith.subf %13, %24 : vector<32x256xf32>
    %26 = vector.broadcast %21 : f32 to vector<32x256xf32>
    %27 = arith.subf %18, %26 : vector<32x256xf32>
    %28 = arith.mulf %25, %25 : vector<32x256xf32>
    %29 = vector.broadcast %22 : f32 to vector<32x256xf32>
    %30 = arith.mulf %28, %29 : vector<32x256xf32>
    %31 = arith.mulf %27, %27 : vector<32x256xf32>
    %32 = vector.broadcast %23 : f32 to vector<32x256xf32>
    %33 = arith.mulf %31, %32 : vector<32x256xf32>
    %34 = arith.addf %30, %33 : vector<32x256xf32>
    %cst = arith.constant 1.000000e+00 : f32
    %35 = vector.broadcast %cst : f32 to vector<32x256xf32>
    %36 = arith.cmpf ole, %34, %35 : vector<32x256xf32>
    %37 = arith.ori %19, %36 : vector<32x256xi1>
    %c4 = arith.constant 4 : index
    %38 = memref.load %arg1[%c4] : memref<32xf32, #tpu.memory_space<smem>>
    %c5 = arith.constant 5 : index
    %39 = memref.load %arg1[%c5] : memref<32xf32, #tpu.memory_space<smem>>
    %c6 = arith.constant 6 : index
    %40 = memref.load %arg1[%c6] : memref<32xf32, #tpu.memory_space<smem>>
    %c7 = arith.constant 7 : index
    %41 = memref.load %arg1[%c7] : memref<32xf32, #tpu.memory_space<smem>>
    %42 = vector.broadcast %38 : f32 to vector<32x256xf32>
    %43 = arith.subf %13, %42 : vector<32x256xf32>
    %44 = vector.broadcast %39 : f32 to vector<32x256xf32>
    %45 = arith.subf %18, %44 : vector<32x256xf32>
    %46 = arith.mulf %43, %43 : vector<32x256xf32>
    %47 = vector.broadcast %40 : f32 to vector<32x256xf32>
    %48 = arith.mulf %46, %47 : vector<32x256xf32>
    %49 = arith.mulf %45, %45 : vector<32x256xf32>
    %50 = vector.broadcast %41 : f32 to vector<32x256xf32>
    %51 = arith.mulf %49, %50 : vector<32x256xf32>
    %52 = arith.addf %48, %51 : vector<32x256xf32>
    %cst_2 = arith.constant 1.000000e+00 : f32
    %53 = vector.broadcast %cst_2 : f32 to vector<32x256xf32>
    %54 = arith.cmpf ole, %52, %53 : vector<32x256xf32>
    %55 = arith.ori %37, %54 : vector<32x256xi1>
    %c8 = arith.constant 8 : index
    %56 = memref.load %arg1[%c8] : memref<32xf32, #tpu.memory_space<smem>>
    %c9 = arith.constant 9 : index
    %57 = memref.load %arg1[%c9] : memref<32xf32, #tpu.memory_space<smem>>
    %c10 = arith.constant 10 : index
    %58 = memref.load %arg1[%c10] : memref<32xf32, #tpu.memory_space<smem>>
    %c11 = arith.constant 11 : index
    %59 = memref.load %arg1[%c11] : memref<32xf32, #tpu.memory_space<smem>>
    %60 = vector.broadcast %56 : f32 to vector<32x256xf32>
    %61 = arith.subf %13, %60 : vector<32x256xf32>
    %62 = vector.broadcast %57 : f32 to vector<32x256xf32>
    %63 = arith.subf %18, %62 : vector<32x256xf32>
    %64 = arith.mulf %61, %61 : vector<32x256xf32>
    %65 = vector.broadcast %58 : f32 to vector<32x256xf32>
    %66 = arith.mulf %64, %65 : vector<32x256xf32>
    %67 = arith.mulf %63, %63 : vector<32x256xf32>
    %68 = vector.broadcast %59 : f32 to vector<32x256xf32>
    %69 = arith.mulf %67, %68 : vector<32x256xf32>
    %70 = arith.addf %66, %69 : vector<32x256xf32>
    %cst_3 = arith.constant 1.000000e+00 : f32
    %71 = vector.broadcast %cst_3 : f32 to vector<32x256xf32>
    %72 = arith.cmpf ole, %70, %71 : vector<32x256xf32>
    %73 = arith.ori %55, %72 : vector<32x256xi1>
    %c12 = arith.constant 12 : index
    %74 = memref.load %arg1[%c12] : memref<32xf32, #tpu.memory_space<smem>>
    %c13 = arith.constant 13 : index
    %75 = memref.load %arg1[%c13] : memref<32xf32, #tpu.memory_space<smem>>
    %c14 = arith.constant 14 : index
    %76 = memref.load %arg1[%c14] : memref<32xf32, #tpu.memory_space<smem>>
    %c15 = arith.constant 15 : index
    %77 = memref.load %arg1[%c15] : memref<32xf32, #tpu.memory_space<smem>>
    %78 = vector.broadcast %74 : f32 to vector<32x256xf32>
    %79 = arith.subf %13, %78 : vector<32x256xf32>
    %80 = vector.broadcast %75 : f32 to vector<32x256xf32>
    %81 = arith.subf %18, %80 : vector<32x256xf32>
    %82 = arith.mulf %79, %79 : vector<32x256xf32>
    %83 = vector.broadcast %76 : f32 to vector<32x256xf32>
    %84 = arith.mulf %82, %83 : vector<32x256xf32>
    %85 = arith.mulf %81, %81 : vector<32x256xf32>
    %86 = vector.broadcast %77 : f32 to vector<32x256xf32>
    %87 = arith.mulf %85, %86 : vector<32x256xf32>
    %88 = arith.addf %84, %87 : vector<32x256xf32>
    %cst_4 = arith.constant 1.000000e+00 : f32
    %89 = vector.broadcast %cst_4 : f32 to vector<32x256xf32>
    %90 = arith.cmpf ole, %88, %89 : vector<32x256xf32>
    %91 = arith.ori %73, %90 : vector<32x256xi1>
    %c16 = arith.constant 16 : index
    %92 = memref.load %arg1[%c16] : memref<32xf32, #tpu.memory_space<smem>>
    %c17 = arith.constant 17 : index
    %93 = memref.load %arg1[%c17] : memref<32xf32, #tpu.memory_space<smem>>
    %c18 = arith.constant 18 : index
    %94 = memref.load %arg1[%c18] : memref<32xf32, #tpu.memory_space<smem>>
    %c19 = arith.constant 19 : index
    %95 = memref.load %arg1[%c19] : memref<32xf32, #tpu.memory_space<smem>>
    %96 = vector.broadcast %92 : f32 to vector<32x256xf32>
    %97 = arith.subf %13, %96 : vector<32x256xf32>
    %98 = vector.broadcast %93 : f32 to vector<32x256xf32>
    %99 = arith.subf %18, %98 : vector<32x256xf32>
    %100 = arith.mulf %97, %97 : vector<32x256xf32>
    %101 = vector.broadcast %94 : f32 to vector<32x256xf32>
    %102 = arith.mulf %100, %101 : vector<32x256xf32>
    %103 = arith.mulf %99, %99 : vector<32x256xf32>
    %104 = vector.broadcast %95 : f32 to vector<32x256xf32>
    %105 = arith.mulf %103, %104 : vector<32x256xf32>
    %106 = arith.addf %102, %105 : vector<32x256xf32>
    %cst_5 = arith.constant 1.000000e+00 : f32
    %107 = vector.broadcast %cst_5 : f32 to vector<32x256xf32>
    %108 = arith.cmpf ole, %106, %107 : vector<32x256xf32>
    %109 = arith.ori %91, %108 : vector<32x256xi1>
    %c20 = arith.constant 20 : index
    %110 = memref.load %arg1[%c20] : memref<32xf32, #tpu.memory_space<smem>>
    %c21 = arith.constant 21 : index
    %111 = memref.load %arg1[%c21] : memref<32xf32, #tpu.memory_space<smem>>
    %c22 = arith.constant 22 : index
    %112 = memref.load %arg1[%c22] : memref<32xf32, #tpu.memory_space<smem>>
    %c23 = arith.constant 23 : index
    %113 = memref.load %arg1[%c23] : memref<32xf32, #tpu.memory_space<smem>>
    %114 = vector.broadcast %110 : f32 to vector<32x256xf32>
    %115 = arith.subf %13, %114 : vector<32x256xf32>
    %116 = vector.broadcast %111 : f32 to vector<32x256xf32>
    %117 = arith.subf %18, %116 : vector<32x256xf32>
    %118 = arith.mulf %115, %115 : vector<32x256xf32>
    %119 = vector.broadcast %112 : f32 to vector<32x256xf32>
    %120 = arith.mulf %118, %119 : vector<32x256xf32>
    %121 = arith.mulf %117, %117 : vector<32x256xf32>
    %122 = vector.broadcast %113 : f32 to vector<32x256xf32>
    %123 = arith.mulf %121, %122 : vector<32x256xf32>
    %124 = arith.addf %120, %123 : vector<32x256xf32>
    %cst_6 = arith.constant 1.000000e+00 : f32
    %125 = vector.broadcast %cst_6 : f32 to vector<32x256xf32>
    %126 = arith.cmpf ole, %124, %125 : vector<32x256xf32>
    %127 = arith.ori %109, %126 : vector<32x256xi1>
    %c24 = arith.constant 24 : index
    %128 = memref.load %arg1[%c24] : memref<32xf32, #tpu.memory_space<smem>>
    %c25 = arith.constant 25 : index
    %129 = memref.load %arg1[%c25] : memref<32xf32, #tpu.memory_space<smem>>
    %c26 = arith.constant 26 : index
    %130 = memref.load %arg1[%c26] : memref<32xf32, #tpu.memory_space<smem>>
    %c27 = arith.constant 27 : index
    %131 = memref.load %arg1[%c27] : memref<32xf32, #tpu.memory_space<smem>>
    %132 = vector.broadcast %128 : f32 to vector<32x256xf32>
    %133 = arith.subf %13, %132 : vector<32x256xf32>
    %134 = vector.broadcast %129 : f32 to vector<32x256xf32>
    %135 = arith.subf %18, %134 : vector<32x256xf32>
    %136 = arith.mulf %133, %133 : vector<32x256xf32>
    %137 = vector.broadcast %130 : f32 to vector<32x256xf32>
    %138 = arith.mulf %136, %137 : vector<32x256xf32>
    %139 = arith.mulf %135, %135 : vector<32x256xf32>
    %140 = vector.broadcast %131 : f32 to vector<32x256xf32>
    %141 = arith.mulf %139, %140 : vector<32x256xf32>
    %142 = arith.addf %138, %141 : vector<32x256xf32>
    %cst_7 = arith.constant 1.000000e+00 : f32
    %143 = vector.broadcast %cst_7 : f32 to vector<32x256xf32>
    %144 = arith.cmpf ole, %142, %143 : vector<32x256xf32>
    %145 = arith.ori %127, %144 : vector<32x256xi1>
    %c28 = arith.constant 28 : index
    %146 = memref.load %arg1[%c28] : memref<32xf32, #tpu.memory_space<smem>>
    %c29 = arith.constant 29 : index
    %147 = memref.load %arg1[%c29] : memref<32xf32, #tpu.memory_space<smem>>
    %c30 = arith.constant 30 : index
    %148 = memref.load %arg1[%c30] : memref<32xf32, #tpu.memory_space<smem>>
    %c31 = arith.constant 31 : index
    %149 = memref.load %arg1[%c31] : memref<32xf32, #tpu.memory_space<smem>>
    %150 = vector.broadcast %146 : f32 to vector<32x256xf32>
    %151 = arith.subf %13, %150 : vector<32x256xf32>
    %152 = vector.broadcast %147 : f32 to vector<32x256xf32>
    %153 = arith.subf %18, %152 : vector<32x256xf32>
    %154 = arith.mulf %151, %151 : vector<32x256xf32>
    %155 = vector.broadcast %148 : f32 to vector<32x256xf32>
    %156 = arith.mulf %154, %155 : vector<32x256xf32>
    %157 = arith.mulf %153, %153 : vector<32x256xf32>
    %158 = vector.broadcast %149 : f32 to vector<32x256xf32>
    %159 = arith.mulf %157, %158 : vector<32x256xf32>
    %160 = arith.addf %156, %159 : vector<32x256xf32>
    %cst_8 = arith.constant 1.000000e+00 : f32
    %161 = vector.broadcast %cst_8 : f32 to vector<32x256xf32>
    %162 = arith.cmpf ole, %160, %161 : vector<32x256xf32>
    %163 = arith.ori %145, %162 : vector<32x256xi1>
    %c0_9 = arith.constant 0 : index
    %c0_10 = arith.constant 0 : index
    %164 = vector.load %arg3[%c0_9, %c0_10] : memref<32x256xi8, #tpu.memory_space<vmem>>, vector<32x256xi8>
    %165 = arith.uitofp %164 : vector<32x256xi8> to vector<32x256xf32>
    %cst_11 = arith.constant 2.550000e+02 : f32
    %166 = vector.broadcast %cst_11 : f32 to vector<32x256xf32>
    %167 = arith.select %163, %166, %165 : vector<32x256xi1>, vector<32x256xf32>
    %168 = arith.fptoui %167 : vector<32x256xf32> to vector<32x256xi8>
    %c0_12 = arith.constant 0 : index
    %c0_13 = arith.constant 0 : index
    %169 = vector.load %arg4[%c0_12, %c0_13] : memref<32x256xi8, #tpu.memory_space<vmem>>, vector<32x256xi8>
    tpu.vector_store %arg4[%c0_12, %c0_13], %168 {strides = array<i32>} : memref<32x256xi8, #tpu.memory_space<vmem>>, vector<32x256xi8>,
    return
  }
  func.func @transform_0(%arg0: i32) -> i32 {
    %c0_i32 = arith.constant 0 : i32
    %c0_i32_0 = arith.constant 0 : i32
    return %c0_i32 : i32
  }
  func.func @transform_1(%arg0: i32) -> i32 {
    %c0_i32 = arith.constant 0 : i32
    %c0_i32_0 = arith.constant 0 : i32
    return %c0_i32 : i32
  }
  func.func @transform_2(%arg0: i32) -> (i32, i32) {
    %c0_i32 = arith.constant 0 : i32
    %c0_i32_0 = arith.constant 0 : i32
    return %arg0, %c0_i32 : i32, i32
  }
  func.func @transform_3(%arg0: i32) -> (i32, i32) {
    %c0_i32 = arith.constant 0 : i32
    %c0_i32_0 = arith.constant 0 : i32
    return %arg0, %c0_i32 : i32, i32
  }
}

</mosaic_0001>

<llo_original>
// kernel: random_spots.3
$region0: #{random_spots.3}
  #allocation0 [shape = 'u32[]', space=smem, size = 0x4, offset = 0x4, fixed_abs, tag = 'smem constant byte address 0x4 - core index']
  #allocation1 [shape = 'u32[144,128]{1,0:T(1,128)}', space=vmem, size = 0x12000, scoped, tag = 'internal scratch']
  %s0 = inlined_call_operand.vmem [shape: f32[32], index: 0, kind: input, shape index: {}]
  %s1 = inlined_call_operand.vmem [shape: f32[2], index: 1, kind: input, shape index: {}]
  %s2 = inlined_call_operand.vmem [shape: u8[64,256], index: 2, kind: input, shape index: {}]
  %s3 = inlined_call_operand.hbm [shape: u8[64,256], index: 3, kind: output, shape index: {}]
  %s4 = sld [smem:[#allocation0]]
  $region53: #{random_spots.3} parent=0
    _
  %s6 = ssub.s32 1, %s4
  %s7 = scalar_select 0, %s6, %s4
  $region1: #{random_spots.3} parent=0
    #allocation2 [shape = 'u8[512]{0}', space=smem, size = 0x200, scoped, tag = 'input window, operand 0, single buffered']
    #allocation3 [shape = 's32[2]{0}', space=sflag, size = 0x8, scoped, tag = 'scoped memory for random_spots.3']
    #allocation4 [shape = 's32[2]{0}', space=sflag, size = 0x8, scoped, tag = 'scoped memory for random_spots.3']
    #allocation5 [shape = 'u8[512]{0}', space=smem, size = 0x200, scoped, tag = 'input window, operand 1, single buffered']
    #allocation6 [shape = 's32[1]{0}', space=sflag, size = 0x4, scoped, tag = 'scoped memory for random_spots.3']
    #allocation7 [shape = 'u8[16384]{0}', space=vmem, size = 0x4000, scoped, tag = 'output window, operand 0']
    %8 = vsyncpa [#allocation4], 0
    %9 = vsyncpa [#allocation6], 0
    %10 = vsyncpa [#allocation3], 0
    %s11 = scalar_lea.sflag [#allocation3], 1
    %12 = vsyncpa %s11, 0
    loop: start=0, step=1, limit=4
    $region2: #{random_spots.3} parent=1 // loop_pre_header
      _
    $region3: #{random_spots.3} parent=1 // loop_header
      %s14 = sphi 0, %s18
      %p15 = scmp.ge.s32.totalorder %s14, 4
      %s22 = sphi 0, %s22
      %s24 = sphi 0, %s22
      %s25 = sphi 0, %s24
      %s39 = sphi 0, %s25
      %s43 = sphi 0, %s43
      %s45 = sphi 0, %s43
      %s46 = sphi 0, %s45
      %s60 = sphi 0, %s46
      %s66 = sphi 0, %s68
      %s69 = sphi 0, %s66
      %s70 = sphi 0, %s69
      %s86 = sphi 0, %s70
      %s92 = sphi 0, %s94
      %s95 = sphi 0, %s92
      %s96 = sphi 0, %s95
      %s112 = sphi 0, %s96
    $region4: #{random_spots.3} parent=1 // loop_header_branch
      %17 = sbr.rel (%p15) target = $region8
    $region5: #{random_spots.3} parent=1 // loop_body
      %s19 = ssub.s32 %s14, 1
      %s20 = ssub.s32 %s14, 2
      %s21 = sadd.s32 %s14, 1
      %s23 = sadd.s32 %s22, 1
      %p26 = scmp.eq.s32.totalorder %s14, 1
      %p27 = scmp.ne.s32.totalorder %s22, %s24
      %p28 = scmp.eq.s32.totalorder %s14, 0
      %p29 = por %p27, %p28
      %p30 = scmp.ne.s32.totalorder %s22, %s24
      %p31 = scmp.eq.s32.totalorder %s19, 1
      %p32 = por %p30, %p31
      %p33 = scmp.ne.s32.totalorder %s24, %s25
      %p34 = scmp.eq.s32.totalorder %s19, 0
      %p35 = por %p33, %p34
      %p36 = scmp.ne.s32.totalorder %s24, %s25
      %p37 = scmp.eq.s32.totalorder %s20, 1
      %p38 = por %p36, %p37
      %p40 = scmp.ne.s32.totalorder %s25, %s39
      %p41 = scmp.eq.s32.totalorder %s20, 0
      %p42 = por %p40, %p41
      %s44 = sadd.s32 %s43, 1
      %p47 = scmp.eq.s32.totalorder %s14, 1
      %p48 = scmp.ne.s32.totalorder %s43, %s45
      %p49 = scmp.eq.s32.totalorder %s14, 0
      %p50 = por %p48, %p49
      %p51 = scmp.ne.s32.totalorder %s43, %s45
      %p52 = scmp.eq.s32.totalorder %s19, 1
      %p53 = por %p51, %p52
      %p54 = scmp.ne.s32.totalorder %s45, %s46
      %p55 = scmp.eq.s32.totalorder %s19, 0
      %p56 = por %p54, %p55
      %p57 = scmp.ne.s32.totalorder %s45, %s46
      %p58 = scmp.eq.s32.totalorder %s20, 1
      %p59 = por %p57, %p58
      %p61 = scmp.ne.s32.totalorder %s46, %s60
      %p62 = scmp.eq.s32.totalorder %s20, 0
      %p63 = por %p61, %p62
      %s64 = ssub.s32 %s14, %s21
      %p65 = scmp.eq.s32.totalorder %s64, 0
      %s67 = sadd.s32 %s66, 1
      %s68 = scalar_select %p65, %s66, %s67
      %p71 = pneg %p65
      %p72 = scmp.eq.s32.totalorder %s14, 1
      %p73 = por %p71, %p72
      %p74 = scmp.ne.s32.totalorder %s66, %s69
      %p75 = scmp.eq.s32.totalorder %s14, 0
      %p76 = por %p74, %p75
      %p77 = scmp.ne.s32.totalorder %s66, %s69
      %p78 = scmp.eq.s32.totalorder %s19, 1
      %p79 = por %p77, %p78
      %p80 = scmp.ne.s32.totalorder %s69, %s70
      %p81 = scmp.eq.s32.totalorder %s19, 0
      %p82 = por %p80, %p81
      %p83 = scmp.ne.s32.totalorder %s69, %s70
      %p84 = scmp.eq.s32.totalorder %s20, 1
      %p85 = por %p83, %p84
      %p87 = scmp.ne.s32.totalorder %s70, %s86
      %p88 = scmp.eq.s32.totalorder %s20, 0
      %p89 = por %p87, %p88
      %s90 = ssub.s32 %s14, %s21
      %p91 = scmp.eq.s32.totalorder %s90, 0
      %s93 = sadd.s32 %s92, 1
      %s94 = scalar_select %p91, %s92, %s93
      %p97 = pneg %p91
      %p98 = scmp.eq.s32.totalorder %s14, 1
      %p99 = por %p97, %p98
      %p100 = scmp.ne.s32.totalorder %s92, %s95
      %p101 = scmp.eq.s32.totalorder %s14, 0
      %p102 = por %p100, %p101
      %p103 = scmp.ne.s32.totalorder %s92, %s95
      %p104 = scmp.eq.s32.totalorder %s19, 1
      %p105 = por %p103, %p104
      %p106 = scmp.ne.s32.totalorder %s95, %s96
      %p107 = scmp.eq.s32.totalorder %s19, 0
      %p108 = por %p106, %p107
      %p109 = scmp.ne.s32.totalorder %s95, %s96
      %p110 = scmp.eq.s32.totalorder %s20, 1
      %p111 = por %p109, %p110
      %p113 = scmp.ne.s32.totalorder %s96, %s112
      %p114 = scmp.eq.s32.totalorder %s20, 0
      %p115 = por %p113, %p114
      %p116 = scmp.le.s32.totalorder 1, %s14
      %p117 = scmp.lt.s32.totalorder %s14, 3
      %p118 = pnand %p116, %p117
      %p119 = pneg %p118
      // Predicated region
      $region9: #{random_spots.3} parent=5 // pred_check
        _
      $region10: #{random_spots.3} parent=5 // pred_check_branch
        %121 = sbr.rel (%p118) target = $region12
      $region11: #{random_spots.3} parent=5 // pred_region
        %s122 = ssub.s32 %s14, 1
        // Predicated region
        $region13: #{random_spots.3} parent=11 // pred_check
          %p123 = pneg %p35
        $region14: #{random_spots.3} parent=11 // pred_check_branch
          %125 = sbr.rel (%p123) target = $region16
        $region15: #{random_spots.3} parent=11 // pred_region
          %s127 = ssub.s32 16, 16
          %128 = vsyncadd [#allocation4], %s127
          %s130 = sshll.u32 %s0, 4
          %s131 = int_to_ptr.vmem [resolvable:$true] %s130
          %133 = dma.vmem_to_smem %s131, 16, [#allocation2], [#allocation4]
        $region16: #{random_spots.3} parent=11 // pred_fallthru
          _
        // Predicated region
        $region17: #{random_spots.3} parent=11 // pred_check
          %p134 = pneg %p56
        $region18: #{random_spots.3} parent=11 // pred_check_branch
          %136 = sbr.rel (%p134) target = $region20
        $region19: #{random_spots.3} parent=11 // pred_region
          %s138 = ssub.s32 16, 16
          %139 = vsyncadd [#allocation6], %s138
          %s141 = sshll.u32 %s1, 4
          %s142 = int_to_ptr.vmem [resolvable:$true] %s141
          %144 = dma.vmem_to_smem %s142, 16, [#allocation5], [#allocation6]
        $region20: #{random_spots.3} parent=11 // pred_fallthru
          _
      $region12: #{random_spots.3} parent=5 // pred_fallthru
        _
      %p145 = scmp.lt.s32.totalorder %s14, 2
      // Predicated region
      $region21: #{random_spots.3} parent=5 // pred_check
        %p146 = pneg %p145
      $region22: #{random_spots.3} parent=5 // pred_check_branch
        %148 = sbr.rel (%p146) target = $region24
      $region23: #{random_spots.3} parent=5 // pred_region
        // Predicated region
        $region25: #{random_spots.3} parent=23 // pred_check
          %p149 = pneg %p76
        $region26: #{random_spots.3} parent=23 // pred_check_branch
          %151 = sbr.rel (%p149) target = $region28
        $region27: #{random_spots.3} parent=23 // pred_region
          %p152 = scmp.lt.s32.totalorder %s14, 1
          %s153 = scalar_select %p152, %s14, 1
          %s154 = smul.addr %s153, 2
          %s155 = smul.addr %s154, 8
          %s156 = scalar_lea.vmem %s2, %s155
        $region28: #{random_spots.3} parent=23 // pred_fallthru
          _
      $region24: #{random_spots.3} parent=5 // pred_fallthru
        _
      %p157 = scmp.le.s32.totalorder 1, %s14
      %p158 = scmp.lt.s32.totalorder %s14, 3
      %p159 = pnand %p157, %p158
      %p160 = pneg %p159
      // Predicated region
      $region29: #{random_spots.3} parent=5 // pred_check
        _
      $region30: #{random_spots.3} parent=5 // pred_check_branch
        %162 = sbr.rel (%p159) target = $region32
      $region31: #{random_spots.3} parent=5 // pred_region
        %s163 = ssub.s32 %s14, 1
        // Predicated region
        $region33: #{random_spots.3} parent=31 // pred_check
          %p164 = pneg %p35
        $region34: #{random_spots.3} parent=31 // pred_check_branch
          %166 = sbr.rel (%p164) target = $region36
        $region35: #{random_spots.3} parent=31 // pred_region
          %167 = dma.done [#allocation4], 16
        $region36: #{random_spots.3} parent=31 // pred_fallthru
          _
        // Predicated region
        $region37: #{random_spots.3} parent=31 // pred_check
          %p168 = pneg %p56
        $region38: #{random_spots.3} parent=31 // pred_check_branch
          %170 = sbr.rel (%p168) target = $region40
        $region39: #{random_spots.3} parent=31 // pred_region
          %171 = dma.done [#allocation6], 16
        $region40: #{random_spots.3} parent=31 // pred_fallthru
          _
        %172 = sfence
        %p173 = pneg %p35
        %p174 = pneg %p32
        %p175 = pneg %p56
        %p176 = pneg %p53
        %p177 = scmp.lt.s32.totalorder %s19, 1
        %s178 = scalar_select %p177, %s19, 1
        %s179 = smul.addr %s178, 2
        %s180 = smul.addr %s179, 8
        %s181 = scalar_lea.vmem %s2, %s180
        %p182 = pneg %p82
        %p183 = pneg %p79
        %p184 = pneg %p108
        %p185 = pneg %p105
        %s186 = sand.u32 %s95, 1
        %s187 = scalar_lea.sflag [#allocation3], %s186
        %s188 = sand.u32 %s95, 1
        %s189 = smul.addr %s188, 16
        %s190 = scalar_lea.vmem [#allocation7], %s189
        %p191 = scmp.lt.s32.totalorder %s19, 1
        %s192 = scalar_select %p191, %s19, 1
        %s193 = smul.addr %s192, 2
        %s194 = smul.addr %s193, 8
        %s195 = scalar_lea.vmem %s2, %s194
        %v196 = vlaneseq
        %v197 = vshrl.u32 %v196, 7
        %v198 = vadd.s32 %v197, 8
        %v199 = vadd.s32 %v197, 16
        %v200 = vadd.s32 %v197, 24
        %s201 = smul.u32 %s19, 32
        %v202 = vstv %s201
        %v203 = vadd.s32 %v197, %v202
        %v204 = vadd.s32 %v198, %v202
        %v205 = vadd.s32 %v199, %v202
        %v206 = vadd.s32 %v200, %v202
        %v207 = vcvt.s32.f32 %v203
        %v208 = vcvt.s32.f32 %v204
        %v209 = vcvt.s32.f32 %v205
        %v210 = vcvt.s32.f32 %v206
        %v211 = vlaneseq
        %v212 = vand.u32 %v211, 127
        %v213 = vadd.s32 %v212, 128
        %v214 = vcvt.s32.f32 %v212
        %v215 = vcvt.s32.f32 %v213
        %s216 = sld [smem:[#allocation5]]
        %s217 = sld [smem:[#allocation5 + $0x1]]
        %v218 = vstv %s216
        %v219 = vmul.f32 %v214, %v218
        %v220 = vmul.f32 %v215, %v218
        %v221 = vstv %s217
        %v222 = vmul.f32 %v207, %v221
        %v223 = vmul.f32 %v208, %v221
        %v224 = vmul.f32 %v209, %v221
        %v225 = vmul.f32 %v210, %v221
        %v226 = vadd.f32 %v219, %v222
        %v227 = vadd.f32 %v220, %v222
        %v228 = vadd.f32 %v219, %v223
        %v229 = vadd.f32 %v220, %v223
        %v230 = vadd.f32 %v219, %v224
        %v231 = vadd.f32 %v220, %v224
        %v232 = vadd.f32 %v219, %v225
        %v233 = vadd.f32 %v220, %v225
        %v234 = vmul.f32 %v207, %v218
        %v235 = vmul.f32 %v208, %v218
        %v236 = vmul.f32 %v209, %v218
        %v237 = vmul.f32 %v210, %v218
        %v238 = vmul.f32 %v214, %v221
        %v239 = vmul.f32 %v215, %v221
        %v240 = vsub.f32 %v234, %v238
        %v241 = vsub.f32 %v234, %v239
        %v242 = vsub.f32 %v235, %v238
        %v243 = vsub.f32 %v235, %v239
        %v244 = vsub.f32 %v236, %v238
        %v245 = vsub.f32 %v236, %v239
        %v246 = vsub.f32 %v237, %v238
        %v247 = vsub.f32 %v237, %v239
        %s248 = sld [smem:[#allocation2]]
        %s249 = sld [smem:[#allocation2 + $0x1]]
        %s250 = sld [smem:[#allocation2 + $0x2]]
        %s251 = sld [smem:[#allocation2 + $0x3]]
        %v252 = vstv %s248
        %v253 = vsub.f32 %v226, %v252
        %v254 = vsub.f32 %v227, %v252
        %v255 = vsub.f32 %v228, %v252
        %v256 = vsub.f32 %v229, %v252
        %v257 = vsub.f32 %v230, %v252
        %v258 = vsub.f32 %v231, %v252
        %v259 = vsub.f32 %v232, %v252
        %v260 = vsub.f32 %v233, %v252
        %v261 = vstv %s249
        %v262 = vsub.f32 %v240, %v261
        %v263 = vsub.f32 %v241, %v261
        %v264 = vsub.f32 %v242, %v261
        %v265 = vsub.f32 %v243, %v261
        %v266 = vsub.f32 %v244, %v261
        %v267 = vsub.f32 %v245, %v261
        %v268 = vsub.f32 %v246, %v261
        %v269 = vsub.f32 %v247, %v261
        %v270 = vmul.f32 %v253, %v253
        %v271 = vmul.f32 %v254, %v254
        %v272 = vmul.f32 %v255, %v255
        %v273 = vmul.f32 %v256, %v256
        %v274 = vmul.f32 %v257, %v257
        %v275 = vmul.f32 %v258, %v258
        %v276 = vmul.f32 %v259, %v259
        %v277 = vmul.f32 %v260, %v260
        %v278 = vstv %s250
        %v279 = vmul.f32 %v270, %v278
        %v280 = vmul.f32 %v271, %v278
        %v281 = vmul.f32 %v272, %v278
        %v282 = vmul.f32 %v273, %v278
        %v283 = vmul.f32 %v274, %v278
        %v284 = vmul.f32 %v275, %v278
        %v285 = vmul.f32 %v276, %v278
        %v286 = vmul.f32 %v277, %v278
        %v287 = vmul.f32 %v262, %v262
        %v288 = vmul.f32 %v263, %v263
        %v289 = vmul.f32 %v264, %v264
        %v290 = vmul.f32 %v265, %v265
        %v291 = vmul.f32 %v266, %v266
        %v292 = vmul.f32 %v267, %v267
        %v293 = vmul.f32 %v268, %v268
        %v294 = vmul.f32 %v269, %v269
        %v295 = vstv %s251
        %v296 = vmul.f32 %v287, %v295
        %v297 = vmul.f32 %v288, %v295
        %v298 = vmul.f32 %v289, %v295
        %v299 = vmul.f32 %v290, %v295
        %v300 = vmul.f32 %v291, %v295
        %v301 = vmul.f32 %v292, %v295
        %v302 = vmul.f32 %v293, %v295
        %v303 = vmul.f32 %v294, %v295
        %v304 = vadd.f32 %v279, %v296
        %v305 = vadd.f32 %v280, %v297
        %v306 = vadd.f32 %v281, %v298
        %v307 = vadd.f32 %v282, %v299
        %v308 = vadd.f32 %v283, %v300
        %v309 = vadd.f32 %v284, %v301
        %v310 = vadd.f32 %v285, %v302
        %v311 = vadd.f32 %v286, %v303
        %vm312 = vcmp.le.f32.partialorder %v304, 1.0
        %vm313 = vcmp.le.f32.partialorder %v305, 1.0
        %vm314 = vcmp.le.f32.partialorder %v306, 1.0
        %vm315 = vcmp.le.f32.partialorder %v307, 1.0
        %vm316 = vcmp.le.f32.partialorder %v308, 1.0
        %vm317 = vcmp.le.f32.partialorder %v309, 1.0
        %vm318 = vcmp.le.f32.partialorder %v310, 1.0
        %vm319 = vcmp.le.f32.partialorder %v311, 1.0
        %s320 = sld [smem:[#allocation2 + $0x4]]
        %s321 = sld [smem:[#allocation2 + $0x5]]
        %s322 = sld [smem:[#allocation2 + $0x6]]
        %s323 = sld [smem:[#allocation2 + $0x7]]
        %v324 = vstv %s320
        %v325 = vsub.f32 %v226, %v324
        %v326 = vsub.f32 %v227, %v324
        %v327 = vsub.f32 %v228, %v324
        %v328 = vsub.f32 %v229, %v324
        %v329 = vsub.f32 %v230, %v324
        %v330 = vsub.f32 %v231, %v324
        %v331 = vsub.f32 %v232, %v324
        %v332 = vsub.f32 %v233, %v324
        %v333 = vstv %s321
        %v334 = vsub.f32 %v240, %v333
        %v335 = vsub.f32 %v241, %v333
        %v336 = vsub.f32 %v242, %v333
        %v337 = vsub.f32 %v243, %v333
        %v338 = vsub.f32 %v244, %v333
        %v339 = vsub.f32 %v245, %v333
        %v340 = vsub.f32 %v246, %v333
        %v341 = vsub.f32 %v247, %v333
        %v342 = vmul.f32 %v325, %v325
        %v343 = vmul.f32 %v326, %v326
        %v344 = vmul.f32 %v327, %v327
        %v345 = vmul.f32 %v328, %v328
        %v346 = vmul.f32 %v329, %v329
        %v347 = vmul.f32 %v330, %v330
        %v348 = vmul.f32 %v331, %v331
        %v349 = vmul.f32 %v332, %v332
        %v350 = vstv %s322
        %v351 = vmul.f32 %v342, %v350
        %v352 = vmul.f32 %v343, %v350
        %v353 = vmul.f32 %v344, %v350
        %v354 = vmul.f32 %v345, %v350
        %v355 = vmul.f32 %v346, %v350
        %v356 = vmul.f32 %v347, %v350
        %v357 = vmul.f32 %v348, %v350
        %v358 = vmul.f32 %v349, %v350
        %v359 = vmul.f32 %v334, %v334
        %v360 = vmul.f32 %v335, %v335
        %v361 = vmul.f32 %v336, %v336
        %v362 = vmul.f32 %v337, %v337
        %v363 = vmul.f32 %v338, %v338
        %v364 = vmul.f32 %v339, %v339
        %v365 = vmul.f32 %v340, %v340
        %v366 = vmul.f32 %v341, %v341
        %v367 = vstv %s323
        %v368 = vmul.f32 %v359, %v367
        %v369 = vmul.f32 %v360, %v367
        %v370 = vmul.f32 %v361, %v367
        %v371 = vmul.f32 %v362, %v367
        %v372 = vmul.f32 %v363, %v367
        %v373 = vmul.f32 %v364, %v367
        %v374 = vmul.f32 %v365, %v367
        %v375 = vmul.f32 %v366, %v367
        %v376 = vadd.f32 %v351, %v368
        %v377 = vadd.f32 %v352, %v369
        %v378 = vadd.f32 %v353, %v370
        %v379 = vadd.f32 %v354, %v371
        %v380 = vadd.f32 %v355, %v372
        %v381 = vadd.f32 %v356, %v373
        %v382 = vadd.f32 %v357, %v374
        %v383 = vadd.f32 %v358, %v375
        %vm384 = vcmp.le.f32.partialorder %v376, 1.0
        %vm385 = vcmp.le.f32.partialorder %v377, 1.0
        %vm386 = vcmp.le.f32.partialorder %v378, 1.0
        %vm387 = vcmp.le.f32.partialorder %v379, 1.0
        %vm388 = vcmp.le.f32.partialorder %v380, 1.0
        %vm389 = vcmp.le.f32.partialorder %v381, 1.0
        %vm390 = vcmp.le.f32.partialorder %v382, 1.0
        %vm391 = vcmp.le.f32.partialorder %v383, 1.0
        %vm392 = vmor %vm312, %vm384
        %vm393 = vmor %vm313, %vm385
        %vm394 = vmor %vm314, %vm386
        %vm395 = vmor %vm315, %vm387
        %vm396 = vmor %vm316, %vm388
        %vm397 = vmor %vm317, %vm389
        %vm398 = vmor %vm318, %vm390
        %vm399 = vmor %vm319, %vm391
        %s400 = sld [smem:[#allocation2 + $0x8]]
        %s401 = sld [smem:[#allocation2 + $0x9]]
        %s402 = sld [smem:[#allocation2 + $0xa]]
        %s403 = sld [smem:[#allocation2 + $0xb]]
        %v404 = vstv %s400
        %v405 = vsub.f32 %v226, %v404
        %v406 = vsub.f32 %v227, %v404
        %v407 = vsub.f32 %v228, %v404
        %v408 = vsub.f32 %v229, %v404
        %v409 = vsub.f32 %v230, %v404
        %v410 = vsub.f32 %v231, %v404
        %v411 = vsub.f32 %v232, %v404
        %v412 = vsub.f32 %v233, %v404
        %v413 = vstv %s401
        %v414 = vsub.f32 %v240, %v413
        %v415 = vsub.f32 %v241, %v413
        %v416 = vsub.f32 %v242, %v413
        %v417 = vsub.f32 %v243, %v413
        %v418 = vsub.f32 %v244, %v413
        %v419 = vsub.f32 %v245, %v413
        %v420 = vsub.f32 %v246, %v413
        %v421 = vsub.f32 %v247, %v413
        %v422 = vmul.f32 %v405, %v405
        %v423 = vmul.f32 %v406, %v406
        %v424 = vmul.f32 %v407, %v407
        %v425 = vmul.f32 %v408, %v408
        %v426 = vmul.f32 %v409, %v409
        %v427 = vmul.f32 %v410, %v410
        %v428 = vmul.f32 %v411, %v411
        %v429 = vmul.f32 %v412, %v412
        %v430 = vstv %s402
        %v431 = vmul.f32 %v422, %v430
        %v432 = vmul.f32 %v423, %v430
        %v433 = vmul.f32 %v424, %v430
        %v434 = vmul.f32 %v425, %v430
        %v435 = vmul.f32 %v426, %v430
        %v436 = vmul.f32 %v427, %v430
        %v437 = vmul.f32 %v428, %v430
        %v438 = vmul.f32 %v429, %v430
        %v439 = vmul.f32 %v414, %v414
        %v440 = vmul.f32 %v415, %v415
        %v441 = vmul.f32 %v416, %v416
        %v442 = vmul.f32 %v417, %v417
        %v443 = vmul.f32 %v418, %v418
        %v444 = vmul.f32 %v419, %v419
        %v445 = vmul.f32 %v420, %v420
        %v446 = vmul.f32 %v421, %v421
        %v447 = vstv %s403
        %v448 = vmul.f32 %v439, %v447
        %v449 = vmul.f32 %v440, %v447
        %v450 = vmul.f32 %v441, %v447
        %v451 = vmul.f32 %v442, %v447
        %v452 = vmul.f32 %v443, %v447
        %v453 = vmul.f32 %v444, %v447
        %v454 = vmul.f32 %v445, %v447
        %v455 = vmul.f32 %v446, %v447
        %v456 = vadd.f32 %v431, %v448
        %v457 = vadd.f32 %v432, %v449
        %v458 = vadd.f32 %v433, %v450
        %v459 = vadd.f32 %v434, %v451
        %v460 = vadd.f32 %v435, %v452
        %v461 = vadd.f32 %v436, %v453
        %v462 = vadd.f32 %v437, %v454
        %v463 = vadd.f32 %v438, %v455
        %vm464 = vcmp.le.f32.partialorder %v456, 1.0
        %vm465 = vcmp.le.f32.partialorder %v457, 1.0
        %vm466 = vcmp.le.f32.partialorder %v458, 1.0
        %vm467 = vcmp.le.f32.partialorder %v459, 1.0
        %vm468 = vcmp.le.f32.partialorder %v460, 1.0
        %vm469 = vcmp.le.f32.partialorder %v461, 1.0
        %vm470 = vcmp.le.f32.partialorder %v462, 1.0
        %vm471 = vcmp.le.f32.partialorder %v463, 1.0
        %vm472 = vmor %vm392, %vm464
        %vm473 = vmor %vm393, %vm465
        %vm474 = vmor %vm394, %vm466
        %vm475 = vmor %vm395, %vm467
        %vm476 = vmor %vm396, %vm468
        %vm477 = vmor %vm397, %vm469
        %vm478 = vmor %vm398, %vm470
        %vm479 = vmor %vm399, %vm471
        %s480 = sld [smem:[#allocation2 + $0xc]]
        %s481 = sld [smem:[#allocation2 + $0xd]]
        %s482 = sld [smem:[#allocation2 + $0xe]]
        %s483 = sld [smem:[#allocation2 + $0xf]]
        %v484 = vstv %s480
        %v485 = vsub.f32 %v226, %v484
        %v486 = vsub.f32 %v227, %v484
        %v487 = vsub.f32 %v228, %v484
        %v488 = vsub.f32 %v229, %v484
        %v489 = vsub.f32 %v230, %v484
        %v490 = vsub.f32 %v231, %v484
        %v491 = vsub.f32 %v232, %v484
        %v492 = vsub.f32 %v233, %v484
        %v493 = vstv %s481
        %v494 = vsub.f32 %v240, %v493
        %v495 = vsub.f32 %v241, %v493
        %v496 = vsub.f32 %v242, %v493
        %v497 = vsub.f32 %v243, %v493
        %v498 = vsub.f32 %v244, %v493
        %v499 = vsub.f32 %v245, %v493
        %v500 = vsub.f32 %v246, %v493
        %v501 = vsub.f32 %v247, %v493
        %v502 = vmul.f32 %v485, %v485
        %v503 = vmul.f32 %v486, %v486
        %v504 = vmul.f32 %v487, %v487
        %v505 = vmul.f32 %v488, %v488
        %v506 = vmul.f32 %v489, %v489
        %v507 = vmul.f32 %v490, %v490
        %v508 = vmul.f32 %v491, %v491
        %v509 = vmul.f32 %v492, %v492
        %v510 = vstv %s482
        %v511 = vmul.f32 %v502, %v510
        %v512 = vmul.f32 %v503, %v510
        %v513 = vmul.f32 %v504, %v510
        %v514 = vmul.f32 %v505, %v510
        %v515 = vmul.f32 %v506, %v510
        %v516 = vmul.f32 %v507, %v510
        %v517 = vmul.f32 %v508, %v510
        %v518 = vmul.f32 %v509, %v510
        %v519 = vmul.f32 %v494, %v494
        %v520 = vmul.f32 %v495, %v495
        %v521 = vmul.f32 %v496, %v496
        %v522 = vmul.f32 %v497, %v497
        %v523 = vmul.f32 %v498, %v498
        %v524 = vmul.f32 %v499, %v499
        %v525 = vmul.f32 %v500, %v500
        %v526 = vmul.f32 %v501, %v501
        %v527 = vstv %s483
        %v528 = vmul.f32 %v519, %v527
        %v529 = vmul.f32 %v520, %v527
        %v530 = vmul.f32 %v521, %v527
        %v531 = vmul.f32 %v522, %v527
        %v532 = vmul.f32 %v523, %v527
        %v533 = vmul.f32 %v524, %v527
        %v534 = vmul.f32 %v525, %v527
        %v535 = vmul.f32 %v526, %v527
        %v536 = vadd.f32 %v511, %v528
        %v537 = vadd.f32 %v512, %v529
        %v538 = vadd.f32 %v513, %v530
        %v539 = vadd.f32 %v514, %v531
        %v540 = vadd.f32 %v515, %v532
        %v541 = vadd.f32 %v516, %v533
        %v542 = vadd.f32 %v517, %v534
        %v543 = vadd.f32 %v518, %v535
        %vm544 = vcmp.le.f32.partialorder %v536, 1.0
        %vm545 = vcmp.le.f32.partialorder %v537, 1.0
        %vm546 = vcmp.le.f32.partialorder %v538, 1.0
        %vm547 = vcmp.le.f32.partialorder %v539, 1.0
        %vm548 = vcmp.le.f32.partialorder %v540, 1.0
        %vm549 = vcmp.le.f32.partialorder %v541, 1.0
        %vm550 = vcmp.le.f32.partialorder %v542, 1.0
        %vm551 = vcmp.le.f32.partialorder %v543, 1.0
        %vm552 = vmor %vm472, %vm544
        %vm553 = vmor %vm473, %vm545
        %vm554 = vmor %vm474, %vm546
        %vm555 = vmor %vm475, %vm547
        %vm556 = vmor %vm476, %vm548
        %vm557 = vmor %vm477, %vm549
        %vm558 = vmor %vm478, %vm550
        %vm559 = vmor %vm479, %vm551
        %s560 = sld [smem:[#allocation2 + $0x10]]
        %s561 = sld [smem:[#allocation2 + $0x11]]
        %s562 = sld [smem:[#allocation2 + $0x12]]
        %s563 = sld [smem:[#allocation2 + $0x13]]
        %v564 = vstv %s560
        %v565 = vsub.f32 %v226, %v564
        %v566 = vsub.f32 %v227, %v564
        %v567 = vsub.f32 %v228, %v564
        %v568 = vsub.f32 %v229, %v564
        %v569 = vsub.f32 %v230, %v564
        %v570 = vsub.f32 %v231, %v564
        %v571 = vsub.f32 %v232, %v564
        %v572 = vsub.f32 %v233, %v564
        %v573 = vstv %s561
        %v574 = vsub.f32 %v240, %v573
        %v575 = vsub.f32 %v241, %v573
        %v576 = vsub.f32 %v242, %v573
        %v577 = vsub.f32 %v243, %v573
        %v578 = vsub.f32 %v244, %v573
        %v579 = vsub.f32 %v245, %v573
        %v580 = vsub.f32 %v246, %v573
        %v581 = vsub.f32 %v247, %v573
        %v582 = vmul.f32 %v565, %v565
        %v583 = vmul.f32 %v566, %v566
        %v584 = vmul.f32 %v567, %v567
        %v585 = vmul.f32 %v568, %v568
        %v586 = vmul.f32 %v569, %v569
        %v587 = vmul.f32 %v570, %v570
        %v588 = vmul.f32 %v571, %v571
        %v589 = vmul.f32 %v572, %v572
        %v590 = vstv %s562
        %v591 = vmul.f32 %v582, %v590
        %v592 = vmul.f32 %v583, %v590
        %v593 = vmul.f32 %v584, %v590
        %v594 = vmul.f32 %v585, %v590
        %v595 = vmul.f32 %v586, %v590
        %v596 = vmul.f32 %v587, %v590
        %v597 = vmul.f32 %v588, %v590
        %v598 = vmul.f32 %v589, %v590
        %v599 = vmul.f32 %v574, %v574
        %v600 = vmul.f32 %v575, %v575
        %v601 = vmul.f32 %v576, %v576
        %v602 = vmul.f32 %v577, %v577
        %v603 = vmul.f32 %v578, %v578
        %v604 = vmul.f32 %v579, %v579
        %v605 = vmul.f32 %v580, %v580
        %v606 = vmul.f32 %v581, %v581
        %v607 = vstv %s563
        %v608 = vmul.f32 %v599, %v607
        %v609 = vmul.f32 %v600, %v607
        %v610 = vmul.f32 %v601, %v607
        %v611 = vmul.f32 %v602, %v607
        %v612 = vmul.f32 %v603, %v607
        %v613 = vmul.f32 %v604, %v607
        %v614 = vmul.f32 %v605, %v607
        %v615 = vmul.f32 %v606, %v607
        %v616 = vadd.f32 %v591, %v608
        %v617 = vadd.f32 %v592, %v609
        %v618 = vadd.f32 %v593, %v610
        %v619 = vadd.f32 %v594, %v611
        %v620 = vadd.f32 %v595, %v612
        %v621 = vadd.f32 %v596, %v613
        %v622 = vadd.f32 %v597, %v614
        %v623 = vadd.f32 %v598, %v615
        %vm624 = vcmp.le.f32.partialorder %v616, 1.0
        %vm625 = vcmp.le.f32.partialorder %v617, 1.0
        %vm626 = vcmp.le.f32.partialorder %v618, 1.0
        %vm627 = vcmp.le.f32.partialorder %v619, 1.0
        %vm628 = vcmp.le.f32.partialorder %v620, 1.0
        %vm629 = vcmp.le.f32.partialorder %v621, 1.0
        %vm630 = vcmp.le.f32.partialorder %v622, 1.0
        %vm631 = vcmp.le.f32.partialorder %v623, 1.0
        %vm632 = vmor %vm552, %vm624
        %vm633 = vmor %vm553, %vm625
        %vm634 = vmor %vm554, %vm626
        %vm635 = vmor %vm555, %vm627
        %vm636 = vmor %vm556, %vm628
        %vm637 = vmor %vm557, %vm629
        %vm638 = vmor %vm558, %vm630
        %vm639 = vmor %vm559, %vm631
        %s640 = sld [smem:[#allocation2 + $0x14]]
        %s641 = sld [smem:[#allocation2 + $0x15]]
        %s642 = sld [smem:[#allocation2 + $0x16]]
        %s643 = sld [smem:[#allocation2 + $0x17]]
        %v644 = vstv %s640
        %v645 = vsub.f32 %v226, %v644
        %v646 = vsub.f32 %v227, %v644
        %v647 = vsub.f32 %v228, %v644
        %v648 = vsub.f32 %v229, %v644
        %v649 = vsub.f32 %v230, %v644
        %v650 = vsub.f32 %v231, %v644
        %v651 = vsub.f32 %v232, %v644
        %v652 = vsub.f32 %v233, %v644
        %v653 = vstv %s641
        %v654 = vsub.f32 %v240, %v653
        %v655 = vsub.f32 %v241, %v653
        %v656 = vsub.f32 %v242, %v653
        %v657 = vsub.f32 %v243, %v653
        %v658 = vsub.f32 %v244, %v653
        %v659 = vsub.f32 %v245, %v653
        %v660 = vsub.f32 %v246, %v653
        %v661 = vsub.f32 %v247, %v653
        %v662 = vmul.f32 %v645, %v645
        %v663 = vmul.f32 %v646, %v646
        %v664 = vmul.f32 %v647, %v647
        %v665 = vmul.f32 %v648, %v648
        %v666 = vmul.f32 %v649, %v649
        %v667 = vmul.f32 %v650, %v650
        %v668 = vmul.f32 %v651, %v651
        %v669 = vmul.f32 %v652, %v652
        %v670 = vstv %s642
        %v671 = vmul.f32 %v662, %v670
        %v672 = vmul.f32 %v663, %v670
        %v673 = vmul.f32 %v664, %v670
        %v674 = vmul.f32 %v665, %v670
        %v675 = vmul.f32 %v666, %v670
        %v676 = vmul.f32 %v667, %v670
        %v677 = vmul.f32 %v668, %v670
        %v678 = vmul.f32 %v669, %v670
        %v679 = vmul.f32 %v654, %v654
        %v680 = vmul.f32 %v655, %v655
        %v681 = vmul.f32 %v656, %v656
        %v682 = vmul.f32 %v657, %v657
        %v683 = vmul.f32 %v658, %v658
        %v684 = vmul.f32 %v659, %v659
        %v685 = vmul.f32 %v660, %v660
        %v686 = vmul.f32 %v661, %v661
        %v687 = vstv %s643
        %v688 = vmul.f32 %v679, %v687
        %v689 = vmul.f32 %v680, %v687
        %v690 = vmul.f32 %v681, %v687
        %v691 = vmul.f32 %v682, %v687
        %v692 = vmul.f32 %v683, %v687
        %v693 = vmul.f32 %v684, %v687
        %v694 = vmul.f32 %v685, %v687
        %v695 = vmul.f32 %v686, %v687
        %v696 = vadd.f32 %v671, %v688
        %v697 = vadd.f32 %v672, %v689
        %v698 = vadd.f32 %v673, %v690
        %v699 = vadd.f32 %v674, %v691
        %v700 = vadd.f32 %v675, %v692
        %v701 = vadd.f32 %v676, %v693
        %v702 = vadd.f32 %v677, %v694
        %v703 = vadd.f32 %v678, %v695
        %vm704 = vcmp.le.f32.partialorder %v696, 1.0
        %vm705 = vcmp.le.f32.partialorder %v697, 1.0
        %vm706 = vcmp.le.f32.partialorder %v698, 1.0
        %vm707 = vcmp.le.f32.partialorder %v699, 1.0
        %vm708 = vcmp.le.f32.partialorder %v700, 1.0
        %vm709 = vcmp.le.f32.partialorder %v701, 1.0
        %vm710 = vcmp.le.f32.partialorder %v702, 1.0
        %vm711 = vcmp.le.f32.partialorder %v703, 1.0
        %vm712 = vmor %vm632, %vm704
        %vm713 = vmor %vm633, %vm705
        %vm714 = vmor %vm634, %vm706
        %vm715 = vmor %vm635, %vm707
        %vm716 = vmor %vm636, %vm708
        %vm717 = vmor %vm637, %vm709
        %vm718 = vmor %vm638, %vm710
        %vm719 = vmor %vm639, %vm711
        %s720 = sld [smem:[#allocation2 + $0x18]]
        %s721 = sld [smem:[#allocation2 + $0x19]]
        %s722 = sld [smem:[#allocation2 + $0x1a]]
        %s723 = sld [smem:[#allocation2 + $0x1b]]
        %v724 = vstv %s720
        %v725 = vsub.f32 %v226, %v724
        %v726 = vsub.f32 %v227, %v724
        %v727 = vsub.f32 %v228, %v724
        %v728 = vsub.f32 %v229, %v724
        %v729 = vsub.f32 %v230, %v724
        %v730 = vsub.f32 %v231, %v724
        %v731 = vsub.f32 %v232, %v724
        %v732 = vsub.f32 %v233, %v724
        %v733 = vstv %s721
        %v734 = vsub.f32 %v240, %v733
        %v735 = vsub.f32 %v241, %v733
        %v736 = vsub.f32 %v242, %v733
        %v737 = vsub.f32 %v243, %v733
        %v738 = vsub.f32 %v244, %v733
        %v739 = vsub.f32 %v245, %v733
        %v740 = vsub.f32 %v246, %v733
        %v741 = vsub.f32 %v247, %v733
        %v742 = vmul.f32 %v725, %v725
        %v743 = vmul.f32 %v726, %v726
        %v744 = vmul.f32 %v727, %v727
        %v745 = vmul.f32 %v728, %v728
        %v746 = vmul.f32 %v729, %v729
        %v747 = vmul.f32 %v730, %v730
        %v748 = vmul.f32 %v731, %v731
        %v749 = vmul.f32 %v732, %v732
        %v750 = vstv %s722
        %v751 = vmul.f32 %v742, %v750
        %v752 = vmul.f32 %v743, %v750
        %v753 = vmul.f32 %v744, %v750
        %v754 = vmul.f32 %v745, %v750
        %v755 = vmul.f32 %v746, %v750
        %v756 = vmul.f32 %v747, %v750
        %v757 = vmul.f32 %v748, %v750
        %v758 = vmul.f32 %v749, %v750
        %v759 = vmul.f32 %v734, %v734
        %v760 = vmul.f32 %v735, %v735
        %v761 = vmul.f32 %v736, %v736
        %v762 = vmul.f32 %v737, %v737
        %v763 = vmul.f32 %v738, %v738
        %v764 = vmul.f32 %v739, %v739
        %v765 = vmul.f32 %v740, %v740
        %v766 = vmul.f32 %v741, %v741
        %v767 = vstv %s723
        %v768 = vmul.f32 %v759, %v767
        %v769 = vmul.f32 %v760, %v767
        %v770 = vmul.f32 %v761, %v767
        %v771 = vmul.f32 %v762, %v767
        %v772 = vmul.f32 %v763, %v767
        %v773 = vmul.f32 %v764, %v767
        %v774 = vmul.f32 %v765, %v767
        %v775 = vmul.f32 %v766, %v767
        %v776 = vadd.f32 %v751, %v768
        %v777 = vadd.f32 %v752, %v769
        %v778 = vadd.f32 %v753, %v770
        %v779 = vadd.f32 %v754, %v771
        %v780 = vadd.f32 %v755, %v772
        %v781 = vadd.f32 %v756, %v773
        %v782 = vadd.f32 %v757, %v774
        %v783 = vadd.f32 %v758, %v775
        %vm784 = vcmp.le.f32.partialorder %v776, 1.0
        %vm785 = vcmp.le.f32.partialorder %v777, 1.0
        %vm786 = vcmp.le.f32.partialorder %v778, 1.0
        %vm787 = vcmp.le.f32.partialorder %v779, 1.0
        %vm788 = vcmp.le.f32.partialorder %v780, 1.0
        %vm789 = vcmp.le.f32.partialorder %v781, 1.0
        %vm790 = vcmp.le.f32.partialorder %v782, 1.0
        %vm791 = vcmp.le.f32.partialorder %v783, 1.0
        %vm792 = vmor %vm712, %vm784
        %vm793 = vmor %vm713, %vm785
        %vm794 = vmor %vm714, %vm786
        %vm795 = vmor %vm715, %vm787
        %vm796 = vmor %vm716, %vm788
        %vm797 = vmor %vm717, %vm789
        %vm798 = vmor %vm718, %vm790
        %vm799 = vmor %vm719, %vm791
        %s800 = sld [smem:[#allocation2 + $0x1c]]
        %s801 = sld [smem:[#allocation2 + $0x1d]]
        %s802 = sld [smem:[#allocation2 + $0x1e]]
        %s803 = sld [smem:[#allocation2 + $0x1f]]
        %v804 = vstv %s800
        %v805 = vsub.f32 %v226, %v804
        %v806 = vsub.f32 %v227, %v804
        %v807 = vsub.f32 %v228, %v804
        %v808 = vsub.f32 %v229, %v804
        %v809 = vsub.f32 %v230, %v804
        %v810 = vsub.f32 %v231, %v804
        %v811 = vsub.f32 %v232, %v804
        %v812 = vsub.f32 %v233, %v804
        %v813 = vstv %s801
        %v814 = vsub.f32 %v240, %v813
        %v815 = vsub.f32 %v241, %v813
        %v816 = vsub.f32 %v242, %v813
        %v817 = vsub.f32 %v243, %v813
        %v818 = vsub.f32 %v244, %v813
        %v819 = vsub.f32 %v245, %v813
        %v820 = vsub.f32 %v246, %v813
        %v821 = vsub.f32 %v247, %v813
        %v822 = vmul.f32 %v805, %v805
        %v823 = vmul.f32 %v806, %v806
        %v824 = vmul.f32 %v807, %v807
        %v825 = vmul.f32 %v808, %v808
        %v826 = vmul.f32 %v809, %v809
        %v827 = vmul.f32 %v810, %v810
        %v828 = vmul.f32 %v811, %v811
        %v829 = vmul.f32 %v812, %v812
        %v830 = vstv %s802
        %v831 = vmul.f32 %v822, %v830
        %v832 = vmul.f32 %v823, %v830
        %v833 = vmul.f32 %v824, %v830
        %v834 = vmul.f32 %v825, %v830
        %v835 = vmul.f32 %v826, %v830
        %v836 = vmul.f32 %v827, %v830
        %v837 = vmul.f32 %v828, %v830
        %v838 = vmul.f32 %v829, %v830
        %v839 = vmul.f32 %v814, %v814
        %v840 = vmul.f32 %v815, %v815
        %v841 = vmul.f32 %v816, %v816
        %v842 = vmul.f32 %v817, %v817
        %v843 = vmul.f32 %v818, %v818
        %v844 = vmul.f32 %v819, %v819
        %v845 = vmul.f32 %v820, %v820
        %v846 = vmul.f32 %v821, %v821
        %v847 = vstv %s803
        %v848 = vmul.f32 %v839, %v847
        %v849 = vmul.f32 %v840, %v847
        %v850 = vmul.f32 %v841, %v847
        %v851 = vmul.f32 %v842, %v847
        %v852 = vmul.f32 %v843, %v847
        %v853 = vmul.f32 %v844, %v847
        %v854 = vmul.f32 %v845, %v847
        %v855 = vmul.f32 %v846, %v847
        %v856 = vadd.f32 %v831, %v848
        %v857 = vadd.f32 %v832, %v849
        %v858 = vadd.f32 %v833, %v850
        %v859 = vadd.f32 %v834, %v851
        %v860 = vadd.f32 %v835, %v852
        %v861 = vadd.f32 %v836, %v853
        %v862 = vadd.f32 %v837, %v854
        %v863 = vadd.f32 %v838, %v855
        %vm864 = vcmp.le.f32.partialorder %v856, 1.0
        %vm865 = vcmp.le.f32.partialorder %v857, 1.0
        %vm866 = vcmp.le.f32.partialorder %v858, 1.0
        %vm867 = vcmp.le.f32.partialorder %v859, 1.0
        %vm868 = vcmp.le.f32.partialorder %v860, 1.0
        %vm869 = vcmp.le.f32.partialorder %v861, 1.0
        %vm870 = vcmp.le.f32.partialorder %v862, 1.0
        %vm871 = vcmp.le.f32.partialorder %v863, 1.0
        %vm872 = vmor %vm792, %vm864
        %vm873 = vmor %vm793, %vm865
        %vm874 = vmor %vm794, %vm866
        %vm875 = vmor %vm795, %vm867
        %vm876 = vmor %vm796, %vm868
        %vm877 = vmor %vm797, %vm869
        %vm878 = vmor %vm798, %vm870
        %vm879 = vmor %vm799, %vm871
        %v880 = vld [vmem:[%s195] sm:$0xff]
        %v881 = vld [vmem:[%s195 + $0x8] sm:$0xff]
        %v882 = vunpack.c.0.s8 %v880
        %v883 = vunpack.c.0.s8 %v881
        %v884 = vunpack.c.1.s8 %v880
        %v885 = vunpack.c.1.s8 %v881
        %v886 = vunpack.c.2.s8 %v880
        %v887 = vunpack.c.2.s8 %v881
        %v888 = vunpack.c.3.s8 %v880
        %v889 = vunpack.c.3.s8 %v881
        %v890 = vand.u32 %v882, 255
        %v891 = vand.u32 %v883, 255
        %v892 = vand.u32 %v884, 255
        %v893 = vand.u32 %v885, 255
        %v894 = vand.u32 %v886, 255
        %v895 = vand.u32 %v887, 255
        %v896 = vand.u32 %v888, 255
        %v897 = vand.u32 %v889, 255
        %v898 = vcvt.s32.f32 %v890
        %v899 = vcvt.s32.f32 %v891
        %v900 = vcvt.s32.f32 %v892
        %v901 = vcvt.s32.f32 %v893
        %v902 = vcvt.s32.f32 %v894
        %v903 = vcvt.s32.f32 %v895
        %v904 = vcvt.s32.f32 %v896
        %v905 = vcvt.s32.f32 %v897
        %v906 = vsel %vm872, 255.0, %v898
        %v907 = vsel %vm873, 255.0, %v899
        %v908 = vsel %vm874, 255.0, %v900
        %v909 = vsel %vm875, 255.0, %v901
        %v910 = vsel %vm876, 255.0, %v902
        %v911 = vsel %vm877, 255.0, %v903
        %v912 = vsel %vm878, 255.0, %v904
        %v913 = vsel %vm879, 255.0, %v905
        %v914 = vtrunc.f32 %v906
        %v915 = vtrunc.f32 %v907
        %v916 = vtrunc.f32 %v908
        %v917 = vtrunc.f32 %v909
        %v918 = vtrunc.f32 %v910
        %v919 = vtrunc.f32 %v911
        %v920 = vtrunc.f32 %v912
        %v921 = vtrunc.f32 %v913
        %v922 = vpack.c.f32.eXmY %v914, %v916, 56
        %v926 = vpack.c.f32.eXmY %v918, %v920, 56
        %v930 = vpack.c.b8 %v926, %v922
        %v932 = vpack.c.f32.eXmY %v915, %v917, 56
        %v936 = vpack.c.f32.eXmY %v919, %v921, 56
        %v940 = vpack.c.b8 %v936, %v932
        %942 = vst [vmem:[%s190] sm:$0xff] %v930
        %943 = vst [vmem:[%s190 + $0x8] sm:$0xff] %v940
        %s944 = sand.u32 %s95, 1
        %s945 = scalar_lea.sflag [#allocation3], %s944
        %s946 = sand.u32 %s95, 1
        %s947 = smul.addr %s946, 16
        %s948 = scalar_lea.vmem [#allocation7], %s947
        // Predicated region
        $region41: #{random_spots.3} parent=31 // pred_check
          %p949 = pneg %p105
        $region42: #{random_spots.3} parent=31 // pred_check_branch
          %951 = sbr.rel (%p949) target = $region44
        $region43: #{random_spots.3} parent=31 // pred_region
          %s953 = ssub.s32 256, 256
          %954 = vsyncadd %s945, %s953
          %s955 = smul.addr %s19, 2
          %s956 = smul.addr %s955, 128
          %s957 = scalar_lea.hbm %s3, %s956
          %s959 = sshll.u32 %s948, 4
          %s960 = int_to_ptr.vmem [resolvable:$true] %s959
          %962 = dma.vmem_to_hbm [thread:$0]  %s960, 256, %s957, %s945
        $region44: #{random_spots.3} parent=31 // pred_fallthru
          _
      $region32: #{random_spots.3} parent=5 // pred_fallthru
        _
      %p963 = scmp.le.s32.totalorder 2, %s14
      // Predicated region
      $region45: #{random_spots.3} parent=5 // pred_check
        %p964 = pneg %p963
      $region46: #{random_spots.3} parent=5 // pred_check_branch
        %966 = sbr.rel (%p964) target = $region48
      $region47: #{random_spots.3} parent=5 // pred_region
        %s967 = ssub.s32 %s14, 2
        // Predicated region
        $region49: #{random_spots.3} parent=47 // pred_check
          %p968 = pneg %p111
        $region50: #{random_spots.3} parent=47 // pred_check_branch
          %970 = sbr.rel (%p968) target = $region52
        $region51: #{random_spots.3} parent=47 // pred_region
          %s971 = sand.u32 %s96, 1
          %s972 = scalar_lea.sflag [#allocation3], %s971
          %s973 = sand.u32 %s96, 1
          %s974 = smul.addr %s973, 16
          %s975 = scalar_lea.vmem [#allocation7], %s974
          %976 = dma.done %s972, 256
        $region52: #{random_spots.3} parent=47 // pred_fallthru
          _
      $region48: #{random_spots.3} parent=5 // pred_fallthru
        _
    $region6: #{random_spots.3} parent=1 // loop_footer
      %s18 = sadd.s32 1, %s14
    $region7: #{random_spots.3} parent=1 // loop_footer_branch
      %13 = sbr.rel target = $region3
    $region8: #{random_spots.3} parent=1 // loop_exit
      _
    %977 = vsyncpa [#allocation3], 1
    %s978 = scalar_lea.sflag [#allocation3], 1
    %979 = vsyncpa %s978, 1
    %980 = vsyncpa [#allocation4], 1
    %s981 = scalar_lea.sflag [#allocation4], 1
    %982 = vsyncpa %s981, 1
    %983 = vsyncpa [#allocation6], 1

</llo_original>
